<compile_context>
chip_gen: v6e
topology: v6e:2x2x1
jax: 0.10.0
libtpu: 0.0.40
codegen_flags: <defaults>
</compile_context>

<pallas_src>
import functools

import jax
import jax.numpy as jnp
from jax.experimental import pallas as pl
from jax.experimental.pallas import tpu as pltpu

LANE = 128
# Widest lane counts tried first: wide, lane-dense blocks -> unmasked vst,
# long DMA bursts, few grid steps.
_COL_CANDIDATES = (4096, 2048, 1024, 512, 256, 128)
# Below this the fixed launch/layout cost can't be amortized; use plain jnp.
_PALLAS_MIN_BYTES = 64 * 1024


def _sublane(itemsize):
    # f32 packs 8 rows per vreg; bf16 16; int8/fp8 32. Tiles are kept multiples
    # of this to avoid relayout copies / masked stores for packed dtypes.
    return {4: 8, 2: 16, 1: 32}.get(itemsize, 8)


def _round_up(a, b):
    return ((a + b - 1) // b) * b


@functools.lru_cache(maxsize=None)
def _vmem_capacity_and_cores():
    """Physical VMEM bytes and a TensorCore-count heuristic for this chip."""
    vmem_cap = None
    try:
        vmem_cap = int(pltpu.get_tpu_info().vmem_capacity_bytes)
    except Exception:
        vmem_cap = None
    if not vmem_cap:
        vmem_cap = 64 << 20          # conservative (v7x-sized) default
    # Heuristic: 64 MiB VMEM per TensorCore => v7x (2 TCs/chip share a
    # "parallel" grid axis); 128 MiB => v5e/v6e single TC. Only affects tiling
    # decisions, never correctness.
    num_cores = 2 if vmem_cap <= (64 << 20) else 1
    return vmem_cap, num_cores


def _general_relu_kernel(params_ref, x_ref, o_ref, *, has_leak, has_sub, has_maxv):
    # params_ref is an SMEM (3,) f32 ref: [leak, sub, maxv] (unused slots = 0).
    x = x_ref[...]
    if has_leak:
        leak = params_ref[0].astype(x.dtype)
        y = jnp.where(x >= 0, x, x * leak)
    else:
        y = jnp.maximum(x, jnp.zeros((), x.dtype))
    if has_sub:
        y = y - params_ref[1].astype(x.dtype)
    if has_maxv:
        y = jnp.minimum(y, params_ref[2].astype(x.dtype))
    o_ref[...] = y


def _general_relu_jnp(x, leak, sub, maxv):
    y = jnp.where(x >= 0, x, x * leak) if leak is not None else jnp.maximum(x, 0)
    if sub is not None:
        y = y - sub
    if maxv is not None:
        y = jnp.minimum(y, maxv)
    return y


def general_relu(x, leak=None, sub=None, maxv=None, *,
                 target_block_bytes=None, use_pallas=None):
    """Elementwise GeneralRelu on an arbitrary-shape array via a Pallas kernel."""
    orig_shape = x.shape
    n = x.size
    itemsize = jnp.dtype(x.dtype).itemsize
    sublane = _sublane(itemsize)

    if use_pallas is None:
        use_pallas = n * itemsize >= _PALLAS_MIN_BYTES

    # Pick the widest lane count that divides n exactly (lane-dense, no pad).
    cols = None
    if use_pallas and n:
        for c in _COL_CANDIDATES:
            if n % c == 0:
                cols = c
                break

    if cols is None:
        # Tiny inputs, or "ragged" flat lengths not a multiple of 128: XLA's
        # fused elementwise path already sits at the HBM roofline (one read +
        # one write).  Any pad/slice or prefix/concat scheme only adds extra
        # HBM round trips, so the jnp path is the fast path here.
        return _general_relu_jnp(x, leak, sub, maxv)

    rows = n // cols
    x2d = x.reshape(rows, cols)

    vmem_cap, num_cores = _vmem_capacity_and_cores()
    vmem_budget = (vmem_cap * 3) // 4            # stay under ~75% of physical VMEM
    if target_block_bytes is None:
        # in + out, double buffered (4 live tiles) + ~4 MiB headroom <= budget.
        target_block_bytes = min(8 << 20,
                                 max(1 << 20, (vmem_budget - (4 << 20)) // 4))

    # Row tile sized to ~target_block_bytes (multiple of the dtype's sublane
    # packing).  Small slabs: one full-extent block on single-TC chips; on
    # dual-TC chips split so both cores get a step.
    tile_rows = max(sublane,
                    (target_block_bytes // (cols * itemsize)) // sublane * sublane)
    if tile_rows >= rows:
        if num_cores > 1 and rows >= num_cores * sublane:
            tile_rows = _round_up(pl.cdiv(rows, num_cores), sublane)
        else:
            tile_rows = rows            # full extent along rows (always legal)
    steps = pl.cdiv(rows, tile_rows)
    if num_cores > 1 and steps > 1 and steps % num_cores:
        # Odd step count on a dual-TC chip idles one core for the tail step;
        # shrink the tile slightly so steps split evenly across cores.
        want = _round_up(steps, num_cores)
        cand = max(sublane, _round_up(pl.cdiv(rows, want), sublane))
        if pl.cdiv(rows, cand) % num_cores == 0:
            tile_rows = cand
            steps = pl.cdiv(rows, cand)
    grid = (steps,)

    tile_bytes = tile_rows * cols * itemsize
    vmem_limit = int(max(min(4 * tile_bytes + (4 << 20), vmem_budget), 16 << 20))

    # Which ops exist is static structure; their *values* are runtime SMEM
    # scalars (scalar prefetch) so hyperparameter sweeps never recompile.
    params = jnp.asarray([0.0 if leak is None else leak,
                          0.0 if sub is None else sub,
                          0.0 if maxv is None else maxv], dtype=jnp.float32)
    kernel = functools.partial(_general_relu_kernel,
                               has_leak=leak is not None,
                               has_sub=sub is not None,
                               has_maxv=maxv is not None)

    out2d = pl.pallas_call(
        kernel,
        out_shape=jax.ShapeDtypeStruct((rows, cols), x2d.dtype),
        grid_spec=pltpu.PrefetchScalarGridSpec(
            num_scalar_prefetch=1,
            grid=grid,
            in_specs=[pl.BlockSpec((tile_rows, cols), lambda i, p: (i, 0))],
            out_specs=pl.BlockSpec((tile_rows, cols), lambda i, p: (i, 0)),
        ),
        compiler_params=pltpu.CompilerParams(
            dimension_semantics=("parallel",),
            vmem_limit_bytes=vmem_limit,
        ),
        cost_estimate=pl.CostEstimate(
            flops=3 * n, transcendentals=0, bytes_accessed=2 * n * itemsize),
    )(params, x2d)

    return out2d.reshape(orig_shape)


def general_relu_reference(x, leak=None, sub=None, maxv=None):
    return _general_relu_jnp(x, leak, sub, maxv)


if __name__ == "__main__":
    key = jax.random.PRNGKey(0)
    k1, k2, k3 = jax.random.split(key, 3)
    leak, sub, maxv = 0.1, 0.4, 6.0

    # Small NCHW activation (forced through the Pallas path to exercise it).
    x = jax.random.normal(k1, (2, 4, 16, 16), dtype=jnp.float32)
    out = jax.block_until_ready(
        general_relu(x, leak=leak, sub=sub, maxv=maxv, use_pallas=True))
    ref = general_relu_reference(x, leak=leak, sub=sub, maxv=maxv)
    assert out.shape == x.shape and out.dtype == x.dtype
    assert jnp.allclose(out, ref, atol=1e-6, rtol=1e-6)

    # Plain-ReLU configuration (leak=None, no sub/maxv).
    out2 = jax.block_until_ready(general_relu(x, use_pallas=True))
    assert jnp.allclose(out2, jnp.maximum(x, 0), atol=1e-6, rtol=1e-6)

    # Larger activation: exercises the wide-lane, tiled (multi-step on v7x) path.
    x_big = jax.random.normal(k2, (4, 64, 32, 32), dtype=jnp.float32)
    out_big = jax.block_until_ready(
        general_relu(x_big, leak=leak, sub=sub, maxv=maxv))
    assert jnp.allclose(out_big,
                        general_relu_reference(x_big, leak, sub, maxv),
                        atol=1e-6, rtol=1e-6)

    # Ragged size: handled by the XLA-fused jnp path (no pad/slice round trips).
    x_rag = jax.random.normal(k3, (2, 3, 7, 5), dtype=jnp.float32)
    out_rag = jax.block_until_ready(
        general_relu(x_rag, leak=leak, sub=sub, maxv=maxv, use_pallas=True))
    assert out_rag.shape == x_rag.shape
    assert jnp.allclose(out_rag,
                        general_relu_reference(x_rag, leak, sub, maxv),
                        atol=1e-6, rtol=1e-6)

    print("KERNEL_OK")
</pallas_src>

<mosaic_0001>
module attributes {stable_mosaic.version = 11 : i64} {
  func.func @_general_relu_kernel(%arg0: i32, %arg1: memref<3xf32, #tpu.memory_space<smem>>, %arg2: memref<1x2048xf32, #tpu.memory_space<vmem>>, %arg3: memref<1x2048xf32, #tpu.memory_space<vmem>>) attributes {dimension_semantics = [#tpu.dimension_semantics<parallel>], iteration_bounds = array<i64: 1>, scalar_prefetch = 1 : i64, scratch_operands = 0 : i64, tpu.core_type = #tpu.core_type<tc>, window_params = [{transform_indices = @transform_0, window_bounds = array<i64: 1, 2048>}, {transform_indices = @transform_1, window_bounds = array<i64: 1, 2048>}]} {
    %c0 = arith.constant 0 : index
    %c0_0 = arith.constant 0 : index
    %0 = vector.load %arg2[%c0, %c0_0] : memref<1x2048xf32, #tpu.memory_space<vmem>>, vector<1x2048xf32>
    %c0_1 = arith.constant 0 : index
    %1 = memref.load %arg1[%c0_1] : memref<3xf32, #tpu.memory_space<smem>>
    %cst = arith.constant 0.000000e+00 : f32
    %2 = vector.broadcast %cst : f32 to vector<1x2048xf32>
    %3 = arith.cmpf oge, %0, %2 : vector<1x2048xf32>
    %4 = vector.broadcast %1 : f32 to vector<1x2048xf32>
    %5 = arith.mulf %0, %4 : vector<1x2048xf32>
    %6 = arith.select %3, %0, %5 : vector<1x2048xi1>, vector<1x2048xf32>
    %c1 = arith.constant 1 : index
    %7 = memref.load %arg1[%c1] : memref<3xf32, #tpu.memory_space<smem>>
    %8 = vector.broadcast %7 : f32 to vector<1x2048xf32>
    %9 = arith.subf %6, %8 : vector<1x2048xf32>
    %c2 = arith.constant 2 : index
    %10 = memref.load %arg1[%c2] : memref<3xf32, #tpu.memory_space<smem>>
    %11 = vector.broadcast %10 : f32 to vector<1x2048xf32>
    %12 = arith.minimumf %9, %11 : vector<1x2048xf32>
    %c0_2 = arith.constant 0 : index
    %c0_3 = arith.constant 0 : index
    %13 = vector.load %arg3[%c0_2, %c0_3] : memref<1x2048xf32, #tpu.memory_space<vmem>>, vector<1x2048xf32>
    tpu.vector_store %arg3[%c0_2, %c0_3], %12 {strides = array<i32>} : memref<1x2048xf32, #tpu.memory_space<vmem>>, vector<1x2048xf32>,
    return
  }
  func.func @transform_0(%arg0: i32, %arg1: memref<3xf32, #tpu.memory_space<smem>>) -> (i32, i32) {
    %c0_i32 = arith.constant 0 : i32
    %c0_i32_0 = arith.constant 0 : i32
    return %arg0, %c0_i32 : i32, i32
  }
  func.func @transform_1(%arg0: i32, %arg1: memref<3xf32, #tpu.memory_space<smem>>) -> (i32, i32) {
    %c0_i32 = arith.constant 0 : i32
    %c0_i32_0 = arith.constant 0 : i32
    return %arg0, %c0_i32 : i32, i32
  }
}

</mosaic_0001>

<llo_original>
// kernel: tpu_custom_call.1
$region0: #{tpu_custom_call.1}
  #allocation0 [shape = 'u32[]', space=smem, size = 0x4, offset = 0x4, fixed_abs, tag = 'smem constant byte address 0x4 - core index']
  #allocation1 [shape = 'u32[144,128]{1,0:T(1,128)}', space=vmem, size = 0x12000, scoped, tag = 'internal scratch']
  #allocation2 [shape = 's32[1]{0}', space=sflag, size = 0x4, scoped, tag = 'scoped memory for tpu_custom_call.1']
  #allocation3 [shape = 'u8[512]{0}', space=smem, size = 0x200, scoped, tag = 'prefetched SMEM operand 0']
  %s0 = inlined_call_operand.hbm [shape: f32[3], index: 0, kind: input, shape index: {}]
  %s1 = inlined_call_operand.hbm [shape: f32[1,2048], index: 1, kind: input, shape index: {}]
  %s2 = inlined_call_operand.hbm [shape: f32[1,2048], index: 2, kind: output, shape index: {}]
  %s3 = sld [smem:[#allocation0]]
  $region18: #{tpu_custom_call.1} parent=0
    _
  %s5 = ssub.s32 1, %s3
  %s6 = scalar_select 0, %s5, %s3
  %8 = dma.hbm_to_smem %s0, 16, [#allocation3], [#allocation2]
  %9 = dma.done [#allocation2], 16
  %10 = sfence
  $region1: #{tpu_custom_call.1} parent=0
    #allocation4 [shape = 'u8[8192]{0}', space=vmem, size = 0x2000, scoped, tag = 'input window, operand 1, single buffered']
    #allocation5 [shape = 's32[1]{0}', space=sflag, size = 0x4, scoped, tag = 'scoped memory for tpu_custom_call.1']
    #allocation6 [shape = 's32[1]{0}', space=sflag, size = 0x4, scoped, tag = 'scoped memory for tpu_custom_call.1']
    #allocation7 [shape = 'u8[8192]{0}', space=vmem, size = 0x2000, scoped, tag = 'output window, operand 0, single buffered']
    %11 = vsyncpa [#allocation5], 0
    %12 = vsyncpa [#allocation6], 0
    // Predicated region
    $region2: #{tpu_custom_call.1} parent=1 // pred_check
      _
    $region3: #{tpu_custom_call.1} parent=1 // pred_check_branch
      %14 = sbr.rel (0) target = $region5
    $region4: #{tpu_custom_call.1} parent=1 // pred_region
      %s16 = ssub.s32 256, 256
      %17 = vsyncadd [#allocation5], %s16
      %s19 = sshll.u32 [#allocation4], 4
      %s20 = int_to_ptr.vmem [resolvable:$true] %s19
      %22 = dma.hbm_to_vmem [thread:$0]  %s1, 256, %s20, [#allocation5]
    $region5: #{tpu_custom_call.1} parent=1 // pred_fallthru
      _
    // Predicated region
    $region6: #{tpu_custom_call.1} parent=1 // pred_check
      _
    $region7: #{tpu_custom_call.1} parent=1 // pred_check_branch
      %24 = sbr.rel (0) target = $region9
    $region8: #{tpu_custom_call.1} parent=1 // pred_region
      %25 = dma.done [#allocation5], 256
    $region9: #{tpu_custom_call.1} parent=1 // pred_fallthru
      _
    %v26 = vld [vmem:[#allocation4] sm:$0xff]
    %v27 = vld [vmem:[#allocation4 + $0x8] sm:$0xff]
    %s28 = sld [smem:[#allocation3]]
    %vm29 = vcmp.ge.f32.partialorder %v26, 0.0
    %vm30 = vcmp.ge.f32.partialorder %v27, 0.0
    %v31 = vstv %s28
    %v32 = vmul.f32 %v26, %v31
    %v33 = vmul.f32 %v27, %v31
    %v34 = vsel %vm29, %v26, %v32
    %v35 = vsel %vm30, %v27, %v33
    %s36 = sld [smem:[#allocation3 + $0x1]]
    %v37 = vstv %s36
    %v38 = vsub.f32 %v34, %v37
    %v39 = vsub.f32 %v35, %v37
    %s40 = sld [smem:[#allocation3 + $0x2]]
    %v41 = vstv %s40
    %v42 = vmin.f32 %v38, %v41
    %v43 = vmin.f32 %v39, %v41
    %44 = vst [vmem:[#allocation7] sm:$0xff] %v42
    %45 = vst [vmem:[#allocation7 + $0x8] sm:$0xff] %v43
    // Predicated region
    $region10: #{tpu_custom_call.1} parent=1 // pred_check
      _
    $region11: #{tpu_custom_call.1} parent=1 // pred_check_branch
      %47 = sbr.rel (0) target = $region13
    $region12: #{tpu_custom_call.1} parent=1 // pred_region
      %s49 = ssub.s32 256, 256
      %50 = vsyncadd [#allocation6], %s49
      %s52 = sshll.u32 [#allocation7], 4
      %s53 = int_to_ptr.vmem [resolvable:$true] %s52
      %55 = dma.vmem_to_hbm [thread:$0]  %s53, 256, %s2, [#allocation6]
    $region13: #{tpu_custom_call.1} parent=1 // pred_fallthru
      _
    // Predicated region
    $region14: #{tpu_custom_call.1} parent=1 // pred_check
      _
    $region15: #{tpu_custom_call.1} parent=1 // pred_check_branch
      %57 = sbr.rel (0) target = $region17
    $region16: #{tpu_custom_call.1} parent=1 // pred_region
      %58 = dma.done [#allocation6], 256
    $region17: #{tpu_custom_call.1} parent=1 // pred_fallthru
      _
    %59 = vsyncpa [#allocation5], 1
    %60 = vsyncpa [#allocation6], 1

</llo_original>
